<compile_context>
chip_gen: v6e
topology: v6e:2x2x1
jax: 0.10.0
libtpu: 0.0.40
codegen_flags: <defaults>
</compile_context>

<pallas_src>
import functools

import jax
import jax.numpy as jnp
from jax.experimental import pallas as pl
from jax.experimental.pallas import tpu as pltpu


def _sgcprop_fused_kernel(a_ref, feat_ref, w_ref, b_ref, o_ref, *,
                          num_layer, activation, use_a2, compute_dtype):
    """All SGConv(k=2) layers fused in one kernel body.

    h_{j+1} = relu?( A^2 @ h_j @ W_j + b_j ), with A^2 either materialized
    once (use_a2=True) or applied as A @ (A @ .) per layer.
    """
    cdt = jnp.dtype(compute_dtype)

    def cast(x):
        # No-op when compute_dtype == float32 (the default).
        return x if x.dtype == cdt else x.astype(cdt)

    a_c = cast(a_ref[...])
    if use_a2:
        # 2-hop propagation operator, computed once and reused by every layer.
        a2 = cast(jnp.dot(a_c, a_c, preferred_element_type=jnp.float32))

    h = feat_ref[...]
    for j in range(num_layer):
        w = w_ref[j]                              # (Fpad, Fpad), static index
        b = b_ref[pl.ds(j, 1), :]                 # (1, Fpad), static index
        hc = cast(h)
        wc = cast(w)
        if use_a2:
            p = jnp.dot(a2, hc, preferred_element_type=jnp.float32)
        else:
            p1 = cast(jnp.dot(a_c, hc, preferred_element_type=jnp.float32))
            p = jnp.dot(a_c, p1, preferred_element_type=jnp.float32)
        out = jnp.dot(cast(p), wc, preferred_element_type=jnp.float32)
        out = out + b                             # bias (f32), broadcast over rows
        if activation and j < num_layer - 1:
            out = jnp.maximum(out, 0.0)           # ReLU on hidden layers only
        # F.dropout on hidden layers is identity in eval mode.
        h = out
    o_ref[...] = h.astype(o_ref.dtype)            # lane-dense (N, Fpad) store


def _padded_vmem_bytes(shape, itemsize):
    """Bytes of one array once padded to the (8, 128) 32-bit VMEM tile."""
    if len(shape) == 1:
        shape = (1,) + tuple(shape)
    lead = 1
    for d in shape[:-2]:
        lead *= int(d)
    r, c = int(shape[-2]), int(shape[-1])
    sub = 8 * (4 // max(1, itemsize))             # sub-32-bit packs along sublanes
    return lead * pl.cdiv(r, sub) * sub * pl.cdiv(c, 128) * 128 * itemsize


def sgcprop_forward(a_hat, feats, weights, biases, *, activation=True,
                    compute_dtype=jnp.float32):
    """SGCprop.forward (eval mode) as a single fused Pallas kernel."""
    num_layer = len(weights)
    n = int(feats.shape[0])
    classes = int(weights[-1].shape[1])

    # Common lane-dense feature width for the whole stack (>= 128, mult of 128).
    feat_dims = [int(weights[0].shape[0])] + [int(w.shape[1]) for w in weights]
    fpad = max(128, pl.cdiv(max(feat_dims), 128) * 128)

    # Pack feats / weights / biases into a few pre-padded f32 slabs
    # (fewer, larger DMAs instead of 2 + 2*num_layer tiny ones).
    feats_p = jnp.zeros((n, fpad), jnp.float32).at[:, :feats.shape[1]].set(feats)
    w_slab = jnp.zeros((num_layer, fpad, fpad), jnp.float32)
    b_slab = jnp.zeros((num_layer, fpad), jnp.float32)
    for j, (w, b) in enumerate(zip(weights, biases)):
        w_slab = w_slab.at[j, :w.shape[0], :w.shape[1]].set(w)
        b_slab = b_slab.at[j, :b.shape[0]].set(b)
    a_hat = a_hat.astype(jnp.float32)

    # Materialize A2 only when it amortizes: 2*N^3 < num_layer * 2*N^2*Fpad.
    use_a2 = n < num_layer * fpad

    inputs = [a_hat, feats_p, w_slab, b_slab]

    # Advisory cost model.
    flops = (2 * n * n * n) if use_a2 else 0
    prop_matmuls_per_layer = 1 if use_a2 else 2
    for _ in range(num_layer):
        flops += prop_matmuls_per_layer * 2 * n * n * fpad   # propagation
        flops += 2 * n * fpad * fpad                          # linear projection
    bytes_accessed = sum(int(x.size) * x.dtype.itemsize for x in inputs)
    bytes_accessed += n * fpad * 4                            # output slab

    # Tight, clamped VMEM budget: operands + output + A2 + a few intermediates.
    vmem_est = sum(_padded_vmem_bytes(x.shape, x.dtype.itemsize) for x in inputs)
    vmem_est += _padded_vmem_bytes((n, fpad), 4)              # output
    if use_a2:
        vmem_est += _padded_vmem_bytes((n, n), 4)             # A2
    vmem_est += 3 * _padded_vmem_bytes((n, fpad), 4)          # live intermediates
    try:
        vmem_capacity = int(pltpu.get_tpu_info().vmem_capacity_bytes)
    except Exception:  # pragma: no cover - conservative fallback (v7x per-TC)
        vmem_capacity = 64 * 1024 * 1024
    vmem_limit = min(vmem_capacity, max(int(vmem_est * 1.25), 8 * 1024 * 1024))

    kernel = functools.partial(
        _sgcprop_fused_kernel,
        num_layer=num_layer, activation=activation, use_a2=use_a2,
        compute_dtype=compute_dtype)
    vmem_spec = pl.BlockSpec(memory_space=pltpu.MemorySpace.VMEM)

    out_pad = pl.pallas_call(
        kernel,
        out_shape=jax.ShapeDtypeStruct((n, fpad), jnp.float32),
        in_specs=[vmem_spec] * len(inputs),
        out_specs=vmem_spec,
        compiler_params=pltpu.CompilerParams(vmem_limit_bytes=vmem_limit),
        cost_estimate=pl.CostEstimate(
            flops=int(flops), transcendentals=0,
            bytes_accessed=int(bytes_accessed)),
    )(*inputs)

    # Padded feature columns are exactly zero through the stack; strip them.
    return out_pad[:, :classes]


def make_normalized_adjacency(key, n):
    """Random undirected graph (+ self loops), D^{-1/2} A D^{-1/2} (DGL norm='both')."""
    probs = jax.random.uniform(key, (n, n))
    adj = (probs < 0.3).astype(jnp.float32)
    adj = jnp.maximum(adj, adj.T)                            # symmetric
    adj = jnp.maximum(adj, jnp.eye(n, dtype=jnp.float32))    # self loops (no 0 degree)
    deg = jnp.sum(adj, axis=1)
    d_inv_sqrt = 1.0 / jnp.sqrt(deg)
    return adj * d_inv_sqrt[:, None] * d_inv_sqrt[None, :]


def init_params(key, input_dim, hidden, classes, num_layer):
    """Deterministic init, shapes matching nn.Linear(in_feats, out_feats)."""
    weights, biases = [], []
    for i in range(num_layer):
        in_feat = input_dim if i == 0 else hidden
        out_feat = hidden if i < num_layer - 1 else classes
        key, wk, bk = jax.random.split(key, 3)
        scale = 1.0 / jnp.sqrt(jnp.float32(in_feat))
        w = jax.random.uniform(wk, (in_feat, out_feat), jnp.float32, -scale, scale)
        b = jax.random.uniform(bk, (out_feat,), jnp.float32, -scale, scale)
        weights.append(w)
        biases.append(b)
    return weights, biases


if __name__ == "__main__":
    # Small, forward-consistent shapes.
    N = 16            # number of graph nodes
    INPUT_DIM = 16
    HIDDEN = 32
    CLASSES = 8
    NUM_LAYER = 2
    ACTIVATION = True

    key = jax.random.PRNGKey(0)
    k_graph, k_feat, k_param = jax.random.split(key, 3)

    a_hat = make_normalized_adjacency(k_graph, N)                   # (N, N)
    feats = jax.random.normal(k_feat, (N, INPUT_DIM), jnp.float32)  # (N, input_dim)
    weights, biases = init_params(k_param, INPUT_DIM, HIDDEN, CLASSES, NUM_LAYER)

    # lwpcgr_1.forward == sum of a single prop() output == SGCprop forward.
    out = sgcprop_forward(a_hat, feats, weights, biases, activation=ACTIVATION)
    out = jax.block_until_ready(out)

    # Pure-JAX reference with the original operation order: A @ (A @ h) @ W + b.
    h_ref = feats
    for j in range(NUM_LAYER):
        h_ref = a_hat @ (a_hat @ h_ref) @ weights[j] + biases[j][None, :]
        if j < NUM_LAYER - 1 and ACTIVATION:
            h_ref = jnp.maximum(h_ref, 0.0)

    assert out.shape == (N, CLASSES)
    # f32 throughout -> only reassociation-level error (A2 vs A@(A@.)).
    assert jnp.allclose(out, h_ref, atol=1e-4, rtol=1e-4)

    print("KERNEL_OK")
</pallas_src>

<mosaic_0001>
module attributes {stable_mosaic.version = 11 : i64} {
  func.func @_sgcprop_fused_kernel(%arg0: memref<16x16xf32, #tpu.memory_space<vmem>>, %arg1: memref<16x128xf32, #tpu.memory_space<vmem>>, %arg2: memref<2x128x128xf32, #tpu.memory_space<vmem>>, %arg3: memref<2x128xf32, #tpu.memory_space<vmem>>, %arg4: memref<16x128xf32, #tpu.memory_space<vmem>>) attributes {dimension_semantics = [], scalar_prefetch = 0 : i64, scratch_operands = 0 : i64, tpu.core_type = #tpu.core_type<tc>} {
    %c0 = arith.constant 0 : index
    %c0_0 = arith.constant 0 : index
    %0 = vector.load %arg0[%c0, %c0_0] : memref<16x16xf32, #tpu.memory_space<vmem>>, vector<16x16xf32>
    %cst = arith.constant dense<0.000000e+00> : vector<16x16xf32>
    %1 = tpu.matmul %0, %0, %cst {dimension_numbers = #tpu.dot_dimension_numbers<[1], [0], [0], [1], [0, 0, 1, 1], [], []>} : vector<16x16xf32>, vector<16x16xf32>, vector<16x16xf32> -> vector<16x16xf32>
    %c0_1 = arith.constant 0 : index
    %c0_2 = arith.constant 0 : index
    %2 = vector.load %arg1[%c0_1, %c0_2] : memref<16x128xf32, #tpu.memory_space<vmem>>, vector<16x128xf32>
    %c0_3 = arith.constant 0 : index
    %c0_4 = arith.constant 0 : index
    %c0_5 = arith.constant 0 : index
    %3 = vector.load %arg2[%c0_3, %c0_4, %c0_5] : memref<2x128x128xf32, #tpu.memory_space<vmem>>, vector<1x128x128xf32>
    %4 = vector.shape_cast %3 : vector<1x128x128xf32> to vector<128x128xf32>
    %c0_6 = arith.constant 0 : index
    %c0_7 = arith.constant 0 : index
    %5 = vector.load %arg3[%c0_6, %c0_7] : memref<2x128xf32, #tpu.memory_space<vmem>>, vector<1x128xf32>
    %cst_8 = arith.constant dense<0.000000e+00> : vector<16x128xf32>
    %6 = tpu.matmul %1, %2, %cst_8 {dimension_numbers = #tpu.dot_dimension_numbers<[1], [0], [0], [1], [0, 0, 1, 1], [], []>} : vector<16x16xf32>, vector<16x128xf32>, vector<16x128xf32> -> vector<16x128xf32>
    %cst_9 = arith.constant dense<0.000000e+00> : vector<16x128xf32>
    %7 = tpu.matmul %6, %4, %cst_9 {dimension_numbers = #tpu.dot_dimension_numbers<[1], [0], [0], [1], [0, 0, 1, 1], [], []>} : vector<16x128xf32>, vector<128x128xf32>, vector<16x128xf32> -> vector<16x128xf32>
    %8 = vector.broadcast %5 : vector<1x128xf32> to vector<16x128xf32>
    %9 = arith.addf %7, %8 : vector<16x128xf32>
    %cst_10 = arith.constant 0.000000e+00 : f32
    %10 = vector.broadcast %cst_10 : f32 to vector<16x128xf32>
    %11 = arith.maximumf %9, %10 : vector<16x128xf32>
    %c1 = arith.constant 1 : index
    %c0_11 = arith.constant 0 : index
    %c0_12 = arith.constant 0 : index
    %12 = vector.load %arg2[%c1, %c0_11, %c0_12] : memref<2x128x128xf32, #tpu.memory_space<vmem>>, vector<1x128x128xf32>
    %13 = vector.shape_cast %12 : vector<1x128x128xf32> to vector<128x128xf32>
    %c1_13 = arith.constant 1 : index
    %c0_14 = arith.constant 0 : index
    %14 = vector.load %arg3[%c1_13, %c0_14] : memref<2x128xf32, #tpu.memory_space<vmem>>, vector<1x128xf32>
    %cst_15 = arith.constant dense<0.000000e+00> : vector<16x128xf32>
    %15 = tpu.matmul %1, %11, %cst_15 {dimension_numbers = #tpu.dot_dimension_numbers<[1], [0], [0], [1], [0, 0, 1, 1], [], []>} : vector<16x16xf32>, vector<16x128xf32>, vector<16x128xf32> -> vector<16x128xf32>
    %cst_16 = arith.constant dense<0.000000e+00> : vector<16x128xf32>
    %16 = tpu.matmul %15, %13, %cst_16 {dimension_numbers = #tpu.dot_dimension_numbers<[1], [0], [0], [1], [0, 0, 1, 1], [], []>} : vector<16x128xf32>, vector<128x128xf32>, vector<16x128xf32> -> vector<16x128xf32>
    %17 = vector.broadcast %14 : vector<1x128xf32> to vector<16x128xf32>
    %18 = arith.addf %16, %17 : vector<16x128xf32>
    %c0_17 = arith.constant 0 : index
    %c0_18 = arith.constant 0 : index
    %19 = vector.load %arg4[%c0_17, %c0_18] : memref<16x128xf32, #tpu.memory_space<vmem>>, vector<16x128xf32>
    tpu.vector_store %arg4[%c0_17, %c0_18], %18 {strides = array<i32>} : memref<16x128xf32, #tpu.memory_space<vmem>>, vector<16x128xf32>,
    return
  }
}

</mosaic_0001>

<llo_original>
// kernel: tpu_custom_call.1
$region0: #{tpu_custom_call.1}
  #allocation0 [shape = 'u32[]', space=smem, size = 0x4, offset = 0x4, fixed_abs, tag = 'smem constant byte address 0x4 - core index']
  #allocation1 [shape = 'u32[144,128]{1,0:T(1,128)}', space=vmem, size = 0x12000, scoped, tag = 'internal scratch']
  %s0 = inlined_call_operand.hbm [shape: f32[16,16], index: 0, kind: input, shape index: {}]
  %s1 = inlined_call_operand.hbm [shape: f32[16,128], index: 1, kind: input, shape index: {}]
  %s2 = inlined_call_operand.hbm [shape: f32[2,128,128], index: 2, kind: input, shape index: {}]
  %s3 = inlined_call_operand.vmem [shape: f32[2,128], index: 3, kind: input, shape index: {}]
  %s4 = inlined_call_operand.hbm [shape: f32[16,128], index: 4, kind: output, shape index: {}]
  %s5 = sld [smem:[#allocation0]]
  $region38: #{tpu_custom_call.1} parent=0
    _
  %s7 = ssub.s32 1, %s5
  %s8 = scalar_select 0, %s7, %s5
  $region1: #{tpu_custom_call.1} parent=0
    #allocation2 [shape = 'u8[8192]{0}', space=vmem, size = 0x2000, scoped, tag = 'input window, operand 0, single buffered']
    #allocation3 [shape = 's32[1]{0}', space=sflag, size = 0x4, scoped, tag = 'scoped memory for tpu_custom_call.1']
    #allocation4 [shape = 's32[1]{0}', space=sflag, size = 0x4, scoped, tag = 'scoped memory for tpu_custom_call.1']
    #allocation5 [shape = 'u8[8192]{0}', space=vmem, size = 0x2000, scoped, tag = 'input window, operand 1, single buffered']
    #allocation6 [shape = 's32[1]{0}', space=sflag, size = 0x4, scoped, tag = 'scoped memory for tpu_custom_call.1']
    #allocation7 [shape = 'u8[131072]{0}', space=vmem, size = 0x20000, scoped, tag = 'input window, operand 2, single buffered']
    #allocation8 [shape = 'u8[8192]{0}', space=vmem, size = 0x2000, scoped, tag = 'output window, operand 0, single buffered']
    %9 = vsyncpa [#allocation3], 0
    %10 = vsyncpa [#allocation6], 0
    %11 = vsyncpa [#allocation4], 0
    // Predicated region
    $region2: #{tpu_custom_call.1} parent=1 // pred_check
      _
    $region3: #{tpu_custom_call.1} parent=1 // pred_check_branch
      %13 = sbr.rel (0) target = $region5
    $region4: #{tpu_custom_call.1} parent=1 // pred_region
      %s15 = ssub.s32 256, 256
      %16 = vsyncadd [#allocation3], %s15
      %s17 = sshll.u32 [#allocation2], 4
      %s18 = int_to_ptr.vmem [resolvable:$true] %s17
      %23 = dma.hbm_to_vmem [thread:$0]  %s0, 256, %s18, [#allocation3], 128, 128, 8
    $region5: #{tpu_custom_call.1} parent=1 // pred_fallthru
      _
    // Predicated region
    $region6: #{tpu_custom_call.1} parent=1 // pred_check
      _
    $region7: #{tpu_custom_call.1} parent=1 // pred_check_branch
      %25 = sbr.rel (0) target = $region9
    $region8: #{tpu_custom_call.1} parent=1 // pred_region
      %s27 = ssub.s32 256, 256
      %28 = vsyncadd [#allocation6], %s27
      %s29 = sshll.u32 [#allocation5], 4
      %s30 = int_to_ptr.vmem [resolvable:$true] %s29
      %35 = dma.hbm_to_vmem [thread:$0]  %s1, 256, %s30, [#allocation6], 128, 128, 8
    $region9: #{tpu_custom_call.1} parent=1 // pred_fallthru
      _
    // Predicated region
    $region10: #{tpu_custom_call.1} parent=1 // pred_check
      _
    $region11: #{tpu_custom_call.1} parent=1 // pred_check_branch
      %37 = sbr.rel (0) target = $region13
    $region12: #{tpu_custom_call.1} parent=1 // pred_region
      %s39 = ssub.s32 4096, 4096
      %40 = vsyncadd [#allocation6], %s39
      %s41 = sshll.u32 [#allocation7], 4
      %s42 = int_to_ptr.vmem [resolvable:$true] %s41
      %47 = dma.hbm_to_vmem [thread:$0]  %s2, 4096, %s42, [#allocation6], 128, 128, 8
    $region13: #{tpu_custom_call.1} parent=1 // pred_fallthru
      _
    // Predicated region
    $region14: #{tpu_custom_call.1} parent=1 // pred_check
      _
    $region15: #{tpu_custom_call.1} parent=1 // pred_check_branch
      %49 = sbr.rel (0) target = $region17
    $region16: #{tpu_custom_call.1} parent=1 // pred_region
      _
    $region17: #{tpu_custom_call.1} parent=1 // pred_fallthru
      _
    // Predicated region
    $region18: #{tpu_custom_call.1} parent=1 // pred_check
      _
    $region19: #{tpu_custom_call.1} parent=1 // pred_check_branch
      %51 = sbr.rel (0) target = $region21
    $region20: #{tpu_custom_call.1} parent=1 // pred_region
      %52 = dma.done [#allocation3], 256
    $region21: #{tpu_custom_call.1} parent=1 // pred_fallthru
      _
    // Predicated region
    $region22: #{tpu_custom_call.1} parent=1 // pred_check
      _
    $region23: #{tpu_custom_call.1} parent=1 // pred_check_branch
      %54 = sbr.rel (0) target = $region25
    $region24: #{tpu_custom_call.1} parent=1 // pred_region
      %55 = dma.done [#allocation6], 256
    $region25: #{tpu_custom_call.1} parent=1 // pred_fallthru
      _
    // Predicated region
    $region26: #{tpu_custom_call.1} parent=1 // pred_check
      _
    $region27: #{tpu_custom_call.1} parent=1 // pred_check_branch
      %57 = sbr.rel (0) target = $region29
    $region28: #{tpu_custom_call.1} parent=1 // pred_region
      %58 = dma.done [#allocation6], 4096
    $region29: #{tpu_custom_call.1} parent=1 // pred_fallthru
      _
    %v59 = vld [vmem:[#allocation2] sm:$0xff]
    %v60 = vld [vmem:[#allocation2 + $0x8] sm:$0xff]
    %vm61 = vcmask 130048
    %v63 = vsel %vm61, %v59, 0
    %v66 = vsel %vm61, %v60, 0
    %68 = vmatprep.subr.mxu0 0.0
    %69 = vmatpush1.msra.mxu0 0.0
    %70 = vmatprep.subr.mxu0 0.0
    %71 = vmatpush1.msra.mxu0 0.0
    %72 = vmatprep.subr.mxu0 0.0
    %73 = vmatpush1.msra.mxu0 0.0
    %74 = vmatprep.subr.mxu0 0.0
    %75 = vmatpush1.msra.mxu0 0.0
    %76 = vmatprep.subr.mxu0 0.0
    %77 = vmatpush1.msra.mxu0 0.0
    %78 = vmatprep.subr.mxu0 0.0
    %79 = vmatpush1.msra.mxu0 0.0
    %80 = vmatprep.subr.mxu0 0.0
    %81 = vmatpush1.msra.mxu0 0.0
    %82 = vmatprep.subr.mxu0 0.0
    %83 = vmatpush1.msra.mxu0 0.0
    %84 = vmatprep.subr.mxu0 0.0
    %85 = vmatpush1.msra.mxu0 0.0
    %86 = vmatprep.subr.mxu0 0.0
    %87 = vmatpush1.msra.mxu0 0.0
    %88 = vmatprep.subr.mxu0 0.0
    %89 = vmatpush1.msra.mxu0 0.0
    %90 = vmatprep.subr.mxu0 0.0
    %91 = vmatpush1.msra.mxu0 0.0
    %92 = vmatprep.subr.mxu0 0.0
    %93 = vmatpush1.msra.mxu0 0.0
    %94 = vmatprep.subr.mxu0 0.0
    %95 = vmatpush1.msra.mxu0 0.0
    %96 = vmatprep.subr.mxu0 0.0
    %97 = vmatpush1.msra.mxu0 %v60
    %98 = vmatprep.subr.mxu0 0.0
    %99 = vmatpush1.msra.mxu0 %v59
    %100 = vmatprep.subr.mxu0 0.0
    %101 = vmatpush2.msra.mxu0 0.0
    %102 = vmatprep.subr.mxu0 0.0
    %103 = vmatpush2.msra.mxu0 0.0
    %104 = vmatprep.subr.mxu0 0.0
    %105 = vmatpush2.msra.mxu0 0.0
    %106 = vmatprep.subr.mxu0 0.0
    %107 = vmatpush2.msra.mxu0 0.0
    %108 = vmatprep.subr.mxu0 0.0
    %109 = vmatpush2.msra.mxu0 0.0
    %110 = vmatprep.subr.mxu0 0.0
    %111 = vmatpush2.msra.mxu0 0.0
    %112 = vmatprep.subr.mxu0 0.0
    %113 = vmatpush2.msra.mxu0 0.0
    %114 = vmatprep.subr.mxu0 0.0
    %115 = vmatpush2.msra.mxu0 0.0
    %116 = vmatprep.subr.mxu0 0.0
    %117 = vmatpush2.msra.mxu0 0.0
    %118 = vmatprep.subr.mxu0 0.0
    %119 = vmatpush2.msra.mxu0 0.0
    %120 = vmatprep.subr.mxu0 0.0
    %121 = vmatpush2.msra.mxu0 0.0
    %122 = vmatprep.subr.mxu0 0.0
    %123 = vmatpush2.msra.mxu0 0.0
    %124 = vmatprep.subr.mxu0 0.0
    %125 = vmatpush2.msra.mxu0 0.0
    %126 = vmatprep.subr.mxu0 0.0
    %127 = vmatpush2.msra.mxu0 0.0
    %128 = vmatprep.subr.mxu0 0.0
    %129 = vmatpush2.msra.mxu0 0.0
    %130 = vmatprep.subr.mxu0 0.0
    %131 = vmatpush2.msra.mxu0 0.0
    %132 = vmatprep.mubr.f32.mxu0 0.0
    %133 = vmatmul.mubr.f32.gmra.mxu0 %v63
    %v134 = vpop.f32.mrf.mxu0
    %v135 = vadd.f32 0.0, %v134
    %v136 = vpop.f32.mrf.mxu0
    %137 = vmatprep.mubr.f32.mxu0 0.0
    %138 = vmatmul.mubr.f32.gmra.mxu0 %v66
    %v139 = vpop.f32.mrf.mxu0
    %v140 = vadd.f32 0.0, %v139
    %v141 = vpop.f32.mrf.mxu0
    %142 = vdwg.mxu0
    %v143 = vld [vmem:[#allocation5] sm:$0xff]
    %v144 = vld [vmem:[#allocation5 + $0x8] sm:$0xff]
    %v145 = vld [vmem:[#allocation7] sm:$0xff]
    %v146 = vld [vmem:[#allocation7 + $0x8] sm:$0xff]
    %v147 = vld [vmem:[#allocation7 + $0x10] sm:$0xff]
    %v148 = vld [vmem:[#allocation7 + $0x18] sm:$0xff]
    %v149 = vld [vmem:[#allocation7 + $0x20] sm:$0xff]
    %v150 = vld [vmem:[#allocation7 + $0x28] sm:$0xff]
    %v151 = vld [vmem:[#allocation7 + $0x30] sm:$0xff]
    %v152 = vld [vmem:[#allocation7 + $0x38] sm:$0xff]
    %v153 = vld [vmem:[#allocation7 + $0x40] sm:$0xff]
    %v154 = vld [vmem:[#allocation7 + $0x48] sm:$0xff]
    %v155 = vld [vmem:[#allocation7 + $0x50] sm:$0xff]
    %v156 = vld [vmem:[#allocation7 + $0x58] sm:$0xff]
    %v157 = vld [vmem:[#allocation7 + $0x60] sm:$0xff]
    %v158 = vld [vmem:[#allocation7 + $0x68] sm:$0xff]
    %v159 = vld [vmem:[#allocation7 + $0x70] sm:$0xff]
    %v160 = vld [vmem:[#allocation7 + $0x78] sm:$0xff]
    %v161 = vld [vmem:[%s3] sm:$0x1]
    %v163 = vsel %vm61, %v135, 0
    %v166 = vsel %vm61, %v140, 0
    %168 = vmatprep.subr.mxu0 0.0
    %169 = vmatpush1.msra.mxu0 0.0
    %170 = vmatprep.subr.mxu0 0.0
    %171 = vmatpush1.msra.mxu0 0.0
    %172 = vmatprep.subr.mxu0 0.0
    %173 = vmatpush1.msra.mxu0 0.0
    %174 = vmatprep.subr.mxu0 0.0
    %175 = vmatpush1.msra.mxu0 0.0
    %176 = vmatprep.subr.mxu0 0.0
    %177 = vmatpush1.msra.mxu0 0.0
    %178 = vmatprep.subr.mxu0 0.0
    %179 = vmatpush1.msra.mxu0 0.0
    %180 = vmatprep.subr.mxu0 0.0
    %181 = vmatpush1.msra.mxu0 0.0
    %182 = vmatprep.subr.mxu0 0.0
    %183 = vmatpush1.msra.mxu0 0.0
    %184 = vmatprep.subr.mxu0 0.0
    %185 = vmatpush1.msra.mxu0 0.0
    %186 = vmatprep.subr.mxu0 0.0
    %187 = vmatpush1.msra.mxu0 0.0
    %188 = vmatprep.subr.mxu0 0.0
    %189 = vmatpush1.msra.mxu0 0.0
    %190 = vmatprep.subr.mxu0 0.0
    %191 = vmatpush1.msra.mxu0 0.0
    %192 = vmatprep.subr.mxu0 0.0
    %193 = vmatpush1.msra.mxu0 0.0
    %194 = vmatprep.subr.mxu0 0.0
    %195 = vmatpush1.msra.mxu0 0.0
    %196 = vmatprep.subr.mxu0 0.0
    %197 = vmatpush1.msra.mxu0 %v144
    %198 = vmatprep.subr.mxu0 0.0
    %199 = vmatpush1.msra.mxu0 %v143
    %200 = vmatprep.subr.mxu0 0.0
    %201 = vmatpush2.msra.mxu0 0.0
    %202 = vmatprep.subr.mxu0 0.0
    %203 = vmatpush2.msra.mxu0 0.0
    %204 = vmatprep.subr.mxu0 0.0
    %205 = vmatpush2.msra.mxu0 0.0
    %206 = vmatprep.subr.mxu0 0.0
    %207 = vmatpush2.msra.mxu0 0.0
    %208 = vmatprep.subr.mxu0 0.0
    %209 = vmatpush2.msra.mxu0 0.0
    %210 = vmatprep.subr.mxu0 0.0
    %211 = vmatpush2.msra.mxu0 0.0
    %212 = vmatprep.subr.mxu0 0.0
    %213 = vmatpush2.msra.mxu0 0.0
    %214 = vmatprep.subr.mxu0 0.0
    %215 = vmatpush2.msra.mxu0 0.0
    %216 = vmatprep.subr.mxu0 0.0
    %217 = vmatpush2.msra.mxu0 0.0
    %218 = vmatprep.subr.mxu0 0.0
    %219 = vmatpush2.msra.mxu0 0.0
    %220 = vmatprep.subr.mxu0 0.0
    %221 = vmatpush2.msra.mxu0 0.0
    %222 = vmatprep.subr.mxu0 0.0
    %223 = vmatpush2.msra.mxu0 0.0
    %224 = vmatprep.subr.mxu0 0.0
    %225 = vmatpush2.msra.mxu0 0.0
    %226 = vmatprep.subr.mxu0 0.0
    %227 = vmatpush2.msra.mxu0 0.0
    %228 = vmatprep.subr.mxu0 0.0
    %229 = vmatpush2.msra.mxu0 0.0
    %230 = vmatprep.subr.mxu0 0.0
    %231 = vmatpush2.msra.mxu0 0.0
    %232 = vmatprep.mubr.f32.mxu0 0.0
    %233 = vmatmul.mubr.f32.gmra.mxu0 %v163
    %v234 = vpop.f32.mrf.mxu0
    %v235 = vadd.f32 0.0, %v234
    %v236 = vpop.f32.mrf.mxu0
    %237 = vmatprep.mubr.f32.mxu0 0.0
    %238 = vmatmul.mubr.f32.gmra.mxu0 %v166
    %v239 = vpop.f32.mrf.mxu0
    %v240 = vadd.f32 0.0, %v239
    %v241 = vpop.f32.mrf.mxu0
    %242 = vdwg.mxu0
    %v243 = vlaneseq
    %v244 = vshrl.u32 %v243, 7
    %v245 = vsub.s32 0, %v244
    %v246 = vrot.slane %v161, %v245
    %247 = vmatprep.subr.mxu0 0.0
    %248 = vmatpush1.msra.mxu0 %v160
    %249 = vmatprep.subr.mxu0 0.0
    %250 = vmatpush1.msra.mxu0 %v159
    %251 = vmatprep.subr.mxu0 0.0
    %252 = vmatpush1.msra.mxu0 %v158
    %253 = vmatprep.subr.mxu0 0.0
    %254 = vmatpush1.msra.mxu0 %v157
    %255 = vmatprep.subr.mxu0 0.0
    %256 = vmatpush1.msra.mxu0 %v156
    %257 = vmatprep.subr.mxu0 0.0
    %258 = vmatpush1.msra.mxu0 %v155
    %259 = vmatprep.subr.mxu0 0.0
    %260 = vmatpush1.msra.mxu0 %v154
    %261 = vmatprep.subr.mxu0 0.0
    %262 = vmatpush1.msra.mxu0 %v153
    %263 = vmatprep.subr.mxu0 0.0
    %264 = vmatpush1.msra.mxu0 %v152
    %265 = vmatprep.subr.mxu0 0.0
    %266 = vmatpush1.msra.mxu0 %v151
    %267 = vmatprep.subr.mxu0 0.0
    %268 = vmatpush1.msra.mxu0 %v150
    %269 = vmatprep.subr.mxu0 0.0
    %270 = vmatpush1.msra.mxu0 %v149
    %271 = vmatprep.subr.mxu0 0.0
    %272 = vmatpush1.msra.mxu0 %v148
    %273 = vmatprep.subr.mxu0 0.0
    %274 = vmatpush1.msra.mxu0 %v147
    %275 = vmatprep.subr.mxu0 0.0
    %276 = vmatpush1.msra.mxu0 %v146
    %277 = vmatprep.subr.mxu0 0.0
    %278 = vmatpush1.msra.mxu0 %v145
    %279 = vmatprep.subr.mxu0 0.0
    %280 = vmatpush2.msra.mxu0 0.0
    %281 = vmatprep.subr.mxu0 0.0
    %282 = vmatpush2.msra.mxu0 0.0
    %283 = vmatprep.subr.mxu0 0.0
    %284 = vmatpush2.msra.mxu0 0.0
    %285 = vmatprep.subr.mxu0 0.0
    %286 = vmatpush2.msra.mxu0 0.0
    %287 = vmatprep.subr.mxu0 0.0
    %288 = vmatpush2.msra.mxu0 0.0
    %289 = vmatprep.subr.mxu0 0.0
    %290 = vmatpush2.msra.mxu0 0.0
    %291 = vmatprep.subr.mxu0 0.0
    %292 = vmatpush2.msra.mxu0 0.0
    %293 = vmatprep.subr.mxu0 0.0
    %294 = vmatpush2.msra.mxu0 0.0
    %295 = vmatprep.subr.mxu0 0.0
    %296 = vmatpush2.msra.mxu0 0.0
    %297 = vmatprep.subr.mxu0 0.0
    %298 = vmatpush2.msra.mxu0 0.0
    %299 = vmatprep.subr.mxu0 0.0
    %300 = vmatpush2.msra.mxu0 0.0
    %301 = vmatprep.subr.mxu0 0.0
    %302 = vmatpush2.msra.mxu0 0.0
    %303 = vmatprep.subr.mxu0 0.0
    %304 = vmatpush2.msra.mxu0 0.0
    %305 = vmatprep.subr.mxu0 0.0
    %306 = vmatpush2.msra.mxu0 0.0
    %307 = vmatprep.subr.mxu0 0.0
    %308 = vmatpush2.msra.mxu0 0.0
    %309 = vmatprep.subr.mxu0 0.0
    %310 = vmatpush2.msra.mxu0 0.0
    %311 = vmatprep.mubr.f32.mxu0 0.0
    %312 = vmatmul.mubr.f32.gmra.mxu0 %v235
    %v313 = vpop.f32.mrf.mxu0
    %v314 = vadd.f32 %v246, %v313
    %v315 = vpop.f32.mrf.mxu0
    %316 = vmatprep.mubr.f32.mxu0 0.0
    %317 = vmatmul.mubr.f32.gmra.mxu0 %v240
    %v318 = vpop.f32.mrf.mxu0
    %v319 = vadd.f32 %v246, %v318
    %v320 = vpop.f32.mrf.mxu0
    %321 = vdwg.mxu0
    %v322 = vmax.f32 %v314, 0.0
    %v323 = vmax.f32 %v319, 0.0
    %s324 = scalar_lea.vmem [#allocation7], 128
    %v325 = vld [vmem:[%s324] sm:$0xff]
    %v326 = vld [vmem:[%s324 + $0x8] sm:$0xff]
    %v327 = vld [vmem:[%s324 + $0x10] sm:$0xff]
    %v328 = vld [vmem:[%s324 + $0x18] sm:$0xff]
    %v329 = vld [vmem:[%s324 + $0x20] sm:$0xff]
    %v330 = vld [vmem:[%s324 + $0x28] sm:$0xff]
    %v331 = vld [vmem:[%s324 + $0x30] sm:$0xff]
    %v332 = vld [vmem:[%s324 + $0x38] sm:$0xff]
    %v333 = vld [vmem:[%s324 + $0x40] sm:$0xff]
    %v334 = vld [vmem:[%s324 + $0x48] sm:$0xff]
    %v335 = vld [vmem:[%s324 + $0x50] sm:$0xff]
    %v336 = vld [vmem:[%s324 + $0x58] sm:$0xff]
    %v337 = vld [vmem:[%s324 + $0x60] sm:$0xff]
    %v338 = vld [vmem:[%s324 + $0x68] sm:$0xff]
    %v339 = vld [vmem:[%s324 + $0x70] sm:$0xff]
    %v340 = vld [vmem:[%s324 + $0x78] sm:$0xff]
    %v341 = vld [vmem:[%s3 + $0x1] sm:$0x1]
    %342 = vmatprep.subr.mxu0 0.0
    %343 = vmatpush1.msra.mxu0 0.0
    %344 = vmatprep.subr.mxu0 0.0
    %345 = vmatpush1.msra.mxu0 0.0
    %346 = vmatprep.subr.mxu0 0.0
    %347 = vmatpush1.msra.mxu0 0.0
    %348 = vmatprep.subr.mxu0 0.0
    %349 = vmatpush1.msra.mxu0 0.0
    %350 = vmatprep.subr.mxu0 0.0
    %351 = vmatpush1.msra.mxu0 0.0
    %352 = vmatprep.subr.mxu0 0.0
    %353 = vmatpush1.msra.mxu0 0.0
    %354 = vmatprep.subr.mxu0 0.0
    %355 = vmatpush1.msra.mxu0 0.0
    %356 = vmatprep.subr.mxu0 0.0
    %357 = vmatpush1.msra.mxu0 0.0
    %358 = vmatprep.subr.mxu0 0.0
    %359 = vmatpush1.msra.mxu0 0.0
    %360 = vmatprep.subr.mxu0 0.0
    %361 = vmatpush1.msra.mxu0 0.0
    %362 = vmatprep.subr.mxu0 0.0
    %363 = vmatpush1.msra.mxu0 0.0
    %364 = vmatprep.subr.mxu0 0.0
    %365 = vmatpush1.msra.mxu0 0.0
    %366 = vmatprep.subr.mxu0 0.0
    %367 = vmatpush1.msra.mxu0 0.0
    %368 = vmatprep.subr.mxu0 0.0
    %369 = vmatpush1.msra.mxu0 0.0
    %370 = vmatprep.subr.mxu0 0.0
    %371 = vmatpush1.msra.mxu0 %v323
    %372 = vmatprep.subr.mxu0 0.0
    %373 = vmatpush1.msra.mxu0 %v322
    %374 = vmatprep.subr.mxu0 0.0
    %375 = vmatpush2.msra.mxu0 0.0
    %376 = vmatprep.subr.mxu0 0.0
    %377 = vmatpush2.msra.mxu0 0.0
    %378 = vmatprep.subr.mxu0 0.0
    %379 = vmatpush2.msra.mxu0 0.0
    %380 = vmatprep.subr.mxu0 0.0
    %381 = vmatpush2.msra.mxu0 0.0
    %382 = vmatprep.subr.mxu0 0.0
    %383 = vmatpush2.msra.mxu0 0.0
    %384 = vmatprep.subr.mxu0 0.0
    %385 = vmatpush2.msra.mxu0 0.0
    %386 = vmatprep.subr.mxu0 0.0
    %387 = vmatpush2.msra.mxu0 0.0
    %388 = vmatprep.subr.mxu0 0.0
    %389 = vmatpush2.msra.mxu0 0.0
    %390 = vmatprep.subr.mxu0 0.0
    %391 = vmatpush2.msra.mxu0 0.0
    %392 = vmatprep.subr.mxu0 0.0
    %393 = vmatpush2.msra.mxu0 0.0
    %394 = vmatprep.subr.mxu0 0.0
    %395 = vmatpush2.msra.mxu0 0.0
    %396 = vmatprep.subr.mxu0 0.0
    %397 = vmatpush2.msra.mxu0 0.0
    %398 = vmatprep.subr.mxu0 0.0
    %399 = vmatpush2.msra.mxu0 0.0
    %400 = vmatprep.subr.mxu0 0.0
    %401 = vmatpush2.msra.mxu0 0.0
    %402 = vmatprep.subr.mxu0 0.0
    %403 = vmatpush2.msra.mxu0 0.0
    %404 = vmatprep.subr.mxu0 0.0
    %405 = vmatpush2.msra.mxu0 0.0
    %406 = vmatprep.mubr.f32.mxu0 0.0
    %407 = vmatmul.mubr.f32.gmra.mxu0 %v163
    %v408 = vpop.f32.mrf.mxu0
    %v409 = vadd.f32 0.0, %v408
    %v410 = vpop.f32.mrf.mxu0
    %411 = vmatprep.mubr.f32.mxu0 0.0
    %412 = vmatmul.mubr.f32.gmra.mxu0 %v166
    %v413 = vpop.f32.mrf.mxu0
    %v414 = vadd.f32 0.0, %v413
    %v415 = vpop.f32.mrf.mxu0
    %416 = vdwg.mxu0
    %v417 = vlaneseq
    %v418 = vshrl.u32 %v417, 7
    %v419 = vsub.s32 0, %v418
    %v420 = vrot.slane %v341, %v419
    %421 = vmatprep.subr.mxu0 0.0
    %422 = vmatpush1.msra.mxu0 %v340
    %423 = vmatprep.subr.mxu0 0.0
    %424 = vmatpush1.msra.mxu0 %v339
    %425 = vmatprep.subr.mxu0 0.0
    %426 = vmatpush1.msra.mxu0 %v338
    %427 = vmatprep.subr.mxu0 0.0
    %428 = vmatpush1.msra.mxu0 %v337
    %429 = vmatprep.subr.mxu0 0.0
    %430 = vmatpush1.msra.mxu0 %v336
    %431 = vmatprep.subr.mxu0 0.0
    %432 = vmatpush1.msra.mxu0 %v335
    %433 = vmatprep.subr.mxu0 0.0
    %434 = vmatpush1.msra.mxu0 %v334
    %435 = vmatprep.subr.mxu0 0.0
    %436 = vmatpush1.msra.mxu0 %v333
    %437 = vmatprep.subr.mxu0 0.0
    %438 = vmatpush1.msra.mxu0 %v332
    %439 = vmatprep.subr.mxu0 0.0
    %440 = vmatpush1.msra.mxu0 %v331
    %441 = vmatprep.subr.mxu0 0.0
    %442 = vmatpush1.msra.mxu0 %v330
    %443 = vmatprep.subr.mxu0 0.0
    %444 = vmatpush1.msra.mxu0 %v329
    %445 = vmatprep.subr.mxu0 0.0
    %446 = vmatpush1.msra.mxu0 %v328
    %447 = vmatprep.subr.mxu0 0.0
    %448 = vmatpush1.msra.mxu0 %v327
    %449 = vmatprep.subr.mxu0 0.0
    %450 = vmatpush1.msra.mxu0 %v326
    %451 = vmatprep.subr.mxu0 0.0
    %452 = vmatpush1.msra.mxu0 %v325
    %453 = vmatprep.subr.mxu0 0.0
    %454 = vmatpush2.msra.mxu0 0.0
    %455 = vmatprep.subr.mxu0 0.0
    %456 = vmatpush2.msra.mxu0 0.0
    %457 = vmatprep.subr.mxu0 0.0
    %458 = vmatpush2.msra.mxu0 0.0
    %459 = vmatprep.subr.mxu0 0.0
    %460 = vmatpush2.msra.mxu0 0.0
    %461 = vmatprep.subr.mxu0 0.0
    %462 = vmatpush2.msra.mxu0 0.0
    %463 = vmatprep.subr.mxu0 0.0
    %464 = vmatpush2.msra.mxu0 0.0
    %465 = vmatprep.subr.mxu0 0.0
    %466 = vmatpush2.msra.mxu0 0.0
    %467 = vmatprep.subr.mxu0 0.0
    %468 = vmatpush2.msra.mxu0 0.0
    %469 = vmatprep.subr.mxu0 0.0
    %470 = vmatpush2.msra.mxu0 0.0
    %471 = vmatprep.subr.mxu0 0.0
    %472 = vmatpush2.msra.mxu0 0.0
    %473 = vmatprep.subr.mxu0 0.0
    %474 = vmatpush2.msra.mxu0 0.0
    %475 = vmatprep.subr.mxu0 0.0
    %476 = vmatpush2.msra.mxu0 0.0
    %477 = vmatprep.subr.mxu0 0.0
    %478 = vmatpush2.msra.mxu0 0.0
    %479 = vmatprep.subr.mxu0 0.0
    %480 = vmatpush2.msra.mxu0 0.0
    %481 = vmatprep.subr.mxu0 0.0
    %482 = vmatpush2.msra.mxu0 0.0
    %483 = vmatprep.subr.mxu0 0.0
    %484 = vmatpush2.msra.mxu0 0.0
    %485 = vmatprep.mubr.f32.mxu0 0.0
    %486 = vmatmul.mubr.f32.gmra.mxu0 %v409
    %v487 = vpop.f32.mrf.mxu0
    %v488 = vadd.f32 %v420, %v487
    %v489 = vpop.f32.mrf.mxu0
    %490 = vmatprep.mubr.f32.mxu0 0.0
    %491 = vmatmul.mubr.f32.gmra.mxu0 %v414
    %v492 = vpop.f32.mrf.mxu0
    %v493 = vadd.f32 %v420, %v492
    %v494 = vpop.f32.mrf.mxu0
    %495 = vdwg.mxu0
    %496 = vst [vmem:[#allocation8] sm:$0xff] %v488
    %497 = vst [vmem:[#allocation8 + $0x8] sm:$0xff] %v493
    // Predicated region
    $region30: #{tpu_custom_call.1} parent=1 // pred_check
      _
    $region31: #{tpu_custom_call.1} parent=1 // pred_check_branch
      %499 = sbr.rel (0) target = $region33
    $region32: #{tpu_custom_call.1} parent=1 // pred_region
      %s501 = ssub.s32 256, 256
      %502 = vsyncadd [#allocation4], %s501
      %s503 = sshll.u32 [#allocation8], 4
      %s504 = int_to_ptr.vmem [resolvable:$true] %s503
      %509 = dma.vmem_to_hbm [thread:$0]  %s504, 256, %s4, [#allocation4], 128, 128, 8
    $region33: #{tpu_custom_call.1} parent=1 // pred_fallthru
      _
    // Predicated region
    $region34: #{tpu_custom_call.1} parent=1 // pred_check
      _
    $region35: #{tpu_custom_call.1} parent=1 // pred_check_branch
      %511 = sbr.rel (0) target = $region37
    $region36: #{tpu_custom_call.1} parent=1 // pred_region
      %512 = dma.done [#allocation4], 256
    $region37: #{tpu_custom_call.1} parent=1 // pred_fallthru
      _
    %513 = vsyncpa [#allocation3], 1
    %514 = vsyncpa [#allocation6], 1
    %515 = vsyncpa [#allocation4], 1

</llo_original>
